<compile_context>
chip_gen: v6e
topology: v6e:2x2x1
jax: 0.10.0
libtpu: 0.0.40
codegen_flags: <defaults>
</compile_context>

<pallas_src>
import math
import functools

import jax
import jax.numpy as jnp
from jax.experimental import pallas as pl
from jax.experimental.pallas import tpu as pltpu

_SUBLANE = 8
_TILE_BYTES = 2 << 20        # ~2 MiB per input/output block (x, t, out each)


def _bce_kernel(x_ref, t_ref, o_ref, *,
                background_weight, focal_alpha, focal_gamma,
                focal_clamp, soft_clamp_value, min_bce):
    x = x_ref[...].astype(jnp.float32)
    t = t_ref[...].astype(jnp.float32)

    # t_zeroone = t.clone(); t_zeroone[t_zeroone > 0] = 1.0
    t01 = jnp.where(t > 0.0, jnp.float32(1.0), t)

    # Stable binary_cross_entropy_with_logits (reduction='none'):
    #   max(x, 0) - x*t + log1p(exp(-|x|))
    e = jnp.exp(-jnp.abs(x))                          # single EUP exp, reused
    bce = jnp.maximum(x, 0.0) - x * t01 + jnp.log1p(e)

    # SoftClamp(m): x[x > m] = m + log(1 - m + x[x > m])
    #             = m + log1p(x - m)  for x > m     (NaN-free form)
    if soft_clamp_value:
        m = jnp.float32(soft_clamp_value)
        bce = jnp.where(bce > m,
                        m + jnp.log1p(jnp.maximum(bce - m, 0.0)),
                        bce)

    if min_bce > 0.0:
        bce = jnp.maximum(bce, jnp.float32(min_bce))

    if focal_gamma != 0.0:
        # Exact sigmoid from the shared e = exp(-|x|):
        #   x >= 0: 1/(1+e)        x < 0: e/(1+e)
        s = 1.0 / (1.0 + e)
        p = jnp.where(x >= 0.0, s, e * s)
        # focal = 1 - pt, pt = p*t01 + (1-p)*(1-t01)  ->  focal = p + t01*(1-2p)
        focal = p + t01 * (1.0 - 2.0 * p)
        if focal_clamp and min_bce > 0.0:
            # clamp_max on pt  <=>  clamp_min on focal = 1 - pt
            focal = jnp.maximum(focal, jnp.float32(1.0 - math.exp(-min_bce)))
        if focal_gamma != 1.0:
            focal = (focal + 0.0001) ** focal_gamma
        # focal_detach is gradient-only; forward value unchanged.
        bce = focal * bce

    if focal_alpha == 0.5:
        bce = 0.5 * bce
    elif focal_alpha >= 0.0:
        alphat = focal_alpha * t01 + (1.0 - focal_alpha) * (1.0 - t01)
        bce = alphat * bce

    # weight_mask = t_zeroone != t; bce[mask] *= t[mask]
    bce = bce * jnp.where(t01 != t, t, jnp.float32(1.0))

    if background_weight != 1.0:
        bce = bce * jnp.where(t == 0.0, jnp.float32(background_weight),
                              jnp.float32(1.0))

    o_ref[...] = bce.astype(o_ref.dtype)


def _choose_layout(shape, n):
    """Pick a (rows, width) 2-D view of the flat data with NO padding.

    Prefers a wide, lane-dense last dim when it divides n exactly (free
    reshape, fat unmasked vld/vst rows).  For ragged sizes, keeps the original
    trailing dim as the lane axis (a full-extent last-dim block is always
    legal), so no jnp.pad / output slice and no extra HBM sweeps are needed.
    """
    for width in (1024, 512, 256, 128):
        if n % width == 0:
            return n // width, width
    if len(shape) >= 2 and shape[-1] > 0:
        return n // shape[-1], shape[-1]
    return 1, n


def bce_loss(x, t, *,
             background_weight=1.0, focal_alpha=0.5, focal_gamma=1.0,
             focal_detach=False, focal_clamp=True, soft_clamp_value=5.0,
             min_bce=0.0, tile_rows=None):
    assert x.shape == t.shape
    del focal_detach  # gradient-only flag; forward value is unaffected.

    orig_shape = x.shape
    orig_dtype = x.dtype
    n = x.size
    itemsize = x.dtype.itemsize

    rows, width = _choose_layout(orig_shape, n)
    xf = x.reshape(rows, width)
    tf = t.reshape(rows, width)

    if tile_rows is None:
        tile_rows = max(_SUBLANE,
                        ((_TILE_BYTES // itemsize) // width)
                        // _SUBLANE * _SUBLANE)
    if tile_rows >= rows:
        tile_rows = rows
    # Guarantee at least 2 grid steps for larger inputs so v7x's two
    # TensorCores both get work (harmless sequential loop on v5e/v6e).
    if rows >= 2 * _SUBLANE and tile_rows > rows // 2:
        tile_rows = max(_SUBLANE, (rows // 2) // _SUBLANE * _SUBLANE)
    assert tile_rows == rows or tile_rows % _SUBLANE == 0, \
        "tile_rows must be a multiple of 8 (or the full row extent)"
    num_tiles = pl.cdiv(rows, tile_rows)   # last block may be partial

    kernel = functools.partial(
        _bce_kernel,
        background_weight=background_weight,
        focal_alpha=focal_alpha,
        focal_gamma=focal_gamma,
        focal_clamp=focal_clamp,
        soft_clamp_value=soft_clamp_value,
        min_bce=min_bce,
    )

    cost = pl.CostEstimate(
        flops=30 * n,
        transcendentals=3 * n,
        bytes_accessed=3 * n * itemsize,
    )

    out = pl.pallas_call(
        kernel,
        out_shape=jax.ShapeDtypeStruct((rows, width), orig_dtype),
        grid_spec=pl.GridSpec(
            grid=(num_tiles,),
            in_specs=[
                pl.BlockSpec((tile_rows, width), lambda i: (i, 0)),
                pl.BlockSpec((tile_rows, width), lambda i: (i, 0)),
            ],
            out_specs=pl.BlockSpec((tile_rows, width), lambda i: (i, 0)),
        ),
        compiler_params=pltpu.CompilerParams(
            dimension_semantics=("parallel",),
            vmem_limit_bytes=32 * 1024 * 1024,
        ),
        cost_estimate=cost,
    )(xf, tf)

    return out.reshape(orig_shape)


def _reference(x, t):
    # Pure-JAX reference of the default-config Bce forward.
    x = x.astype(jnp.float32)
    t = t.astype(jnp.float32)
    t01 = jnp.where(t > 0.0, 1.0, t)
    bce = jnp.maximum(x, 0.0) - x * t01 + jnp.log1p(jnp.exp(-jnp.abs(x)))
    bce = jnp.where(bce > 5.0, 5.0 + jnp.log1p(jnp.maximum(bce - 5.0, 0.0)),
                    bce)
    p = jax.nn.sigmoid(x)
    pt = p * t01 + (1.0 - p) * (1.0 - t01)
    bce = (1.0 - pt) * bce
    bce = 0.5 * bce
    bce = jnp.where(t01 != t, bce * t, bce)
    return bce


if __name__ == "__main__":
    key = jax.random.PRNGKey(0)
    kx, kt = jax.random.split(key)

    # Primary check: NCHW layout matching the PyTorch module; lane-dense
    # aligned fast path (n % 1024 == 0 -> free reshape, no padding).
    B, C, H, W = 2, 4, 16, 16
    x = jax.random.normal(kx, (B, C, H, W), dtype=jnp.float32) * 3.0
    tr = jax.random.uniform(kt, (B, C, H, W), dtype=jnp.float32)
    # Mix of background (0), full foreground (1) and fractional positives
    # (triggers the t_zeroone != t reweighting path).
    t = jnp.where(tr < 0.4, 0.0, jnp.where(tr < 0.7, 1.0, tr))

    out = jax.block_until_ready(bce_loss(x, t))
    ref = _reference(x, t)
    assert out.shape == x.shape and out.dtype == x.dtype
    assert jnp.allclose(out, ref, atol=1e-4, rtol=1e-4), \
        float(jnp.max(jnp.abs(out - ref)))

    # Secondary check: ragged size -> (264, 31) view, multi-tile grid with a
    # partial final row-block (exercises the no-pad ragged path).
    x2 = jax.random.normal(kx, (2, 4, 33, 31), dtype=jnp.float32) * 3.0
    tr2 = jax.random.uniform(kt, (2, 4, 33, 31), dtype=jnp.float32)
    t2 = jnp.where(tr2 < 0.4, 0.0, jnp.where(tr2 < 0.7, 1.0, tr2))
    out2 = jax.block_until_ready(bce_loss(x2, t2))
    ref2 = _reference(x2, t2)
    assert out2.shape == x2.shape and out2.dtype == x2.dtype
    assert jnp.allclose(out2, ref2, atol=1e-4, rtol=1e-4), \
        float(jnp.max(jnp.abs(out2 - ref2)))

    print("KERNEL_OK")
</pallas_src>

<mosaic_0001>
module attributes {stable_mosaic.version = 11 : i64} {
  func.func @_bce_kernel(%arg0: i32, %arg1: memref<2x1024xf32, #tpu.memory_space<vmem>>, %arg2: memref<2x1024xf32, #tpu.memory_space<vmem>>, %arg3: memref<2x1024xf32, #tpu.memory_space<vmem>>) attributes {dimension_semantics = [#tpu.dimension_semantics<parallel>], iteration_bounds = array<i64: 1>, scalar_prefetch = 0 : i64, scratch_operands = 0 : i64, tpu.core_type = #tpu.core_type<tc>, window_params = [{transform_indices = @transform_0, window_bounds = array<i64: 2, 1024>}, {transform_indices = @transform_1, window_bounds = array<i64: 2, 1024>}, {transform_indices = @transform_2, window_bounds = array<i64: 2, 1024>}]} {
    %c0 = arith.constant 0 : index
    %c0_0 = arith.constant 0 : index
    %0 = vector.load %arg1[%c0, %c0_0] : memref<2x1024xf32, #tpu.memory_space<vmem>>, vector<2x1024xf32>
    %c0_1 = arith.constant 0 : index
    %c0_2 = arith.constant 0 : index
    %1 = vector.load %arg2[%c0_1, %c0_2] : memref<2x1024xf32, #tpu.memory_space<vmem>>, vector<2x1024xf32>
    %cst = arith.constant 0.000000e+00 : f32
    %2 = vector.broadcast %cst : f32 to vector<2x1024xf32>
    %3 = arith.cmpf ogt, %1, %2 : vector<2x1024xf32>
    %cst_3 = arith.constant 1.000000e+00 : f32
    %4 = vector.broadcast %cst_3 : f32 to vector<2x1024xf32>
    %5 = arith.select %3, %4, %1 : vector<2x1024xi1>, vector<2x1024xf32>
    %6 = math.absf %0 : vector<2x1024xf32>
    %cst_4 = arith.constant 0.000000e+00 : f32
    %7 = vector.broadcast %cst_4 : f32 to vector<2x1024xf32>
    %8 = arith.subf %7, %6 : vector<2x1024xf32>
    %9 = math.exp %8 : vector<2x1024xf32>
    %cst_5 = arith.constant 0.000000e+00 : f32
    %10 = vector.broadcast %cst_5 : f32 to vector<2x1024xf32>
    %11 = arith.maximumf %0, %10 : vector<2x1024xf32>
    %12 = arith.mulf %0, %5 : vector<2x1024xf32>
    %13 = arith.subf %11, %12 : vector<2x1024xf32>
    %14 = math.log1p %9 : vector<2x1024xf32>
    %15 = arith.addf %13, %14 : vector<2x1024xf32>
    %cst_6 = arith.constant 5.000000e+00 : f32
    %16 = vector.broadcast %cst_6 : f32 to vector<2x1024xf32>
    %17 = arith.cmpf ogt, %15, %16 : vector<2x1024xf32>
    %cst_7 = arith.constant 5.000000e+00 : f32
    %18 = vector.broadcast %cst_7 : f32 to vector<2x1024xf32>
    %19 = arith.subf %15, %18 : vector<2x1024xf32>
    %cst_8 = arith.constant 0.000000e+00 : f32
    %20 = vector.broadcast %cst_8 : f32 to vector<2x1024xf32>
    %21 = arith.maximumf %19, %20 : vector<2x1024xf32>
    %22 = math.log1p %21 : vector<2x1024xf32>
    %cst_9 = arith.constant 5.000000e+00 : f32
    %23 = vector.broadcast %cst_9 : f32 to vector<2x1024xf32>
    %24 = arith.addf %23, %22 : vector<2x1024xf32>
    %25 = arith.select %17, %24, %15 : vector<2x1024xi1>, vector<2x1024xf32>
    %cst_10 = arith.constant 1.000000e+00 : f32
    %26 = vector.broadcast %cst_10 : f32 to vector<2x1024xf32>
    %27 = arith.addf %26, %9 : vector<2x1024xf32>
    %cst_11 = arith.constant 1.000000e+00 : f32
    %28 = vector.broadcast %cst_11 : f32 to vector<2x1024xf32>
    %29 = arith.divf %28, %27 : vector<2x1024xf32>
    %cst_12 = arith.constant 0.000000e+00 : f32
    %30 = vector.broadcast %cst_12 : f32 to vector<2x1024xf32>
    %31 = arith.cmpf oge, %0, %30 : vector<2x1024xf32>
    %32 = arith.mulf %9, %29 : vector<2x1024xf32>
    %33 = arith.select %31, %29, %32 : vector<2x1024xi1>, vector<2x1024xf32>
    %cst_13 = arith.constant 2.000000e+00 : f32
    %34 = vector.broadcast %cst_13 : f32 to vector<2x1024xf32>
    %35 = arith.mulf %34, %33 : vector<2x1024xf32>
    %cst_14 = arith.constant 1.000000e+00 : f32
    %36 = vector.broadcast %cst_14 : f32 to vector<2x1024xf32>
    %37 = arith.subf %36, %35 : vector<2x1024xf32>
    %38 = arith.mulf %5, %37 : vector<2x1024xf32>
    %39 = arith.addf %33, %38 : vector<2x1024xf32>
    %40 = arith.mulf %39, %25 : vector<2x1024xf32>
    %cst_15 = arith.constant 5.000000e-01 : f32
    %41 = vector.broadcast %cst_15 : f32 to vector<2x1024xf32>
    %42 = arith.mulf %41, %40 : vector<2x1024xf32>
    %43 = arith.cmpf one, %5, %1 : vector<2x1024xf32>
    %cst_16 = arith.constant 1.000000e+00 : f32
    %44 = vector.broadcast %cst_16 : f32 to vector<2x1024xf32>
    %45 = arith.select %43, %1, %44 : vector<2x1024xi1>, vector<2x1024xf32>
    %46 = arith.mulf %42, %45 : vector<2x1024xf32>
    %c0_17 = arith.constant 0 : index
    %c0_18 = arith.constant 0 : index
    %47 = vector.load %arg3[%c0_17, %c0_18] : memref<2x1024xf32, #tpu.memory_space<vmem>>, vector<2x1024xf32>
    tpu.vector_store %arg3[%c0_17, %c0_18], %46 {strides = array<i32>} : memref<2x1024xf32, #tpu.memory_space<vmem>>, vector<2x1024xf32>,
    return
  }
  func.func @transform_0(%arg0: i32) -> (i32, i32) {
    %c0_i32 = arith.constant 0 : i32
    %c0_i32_0 = arith.constant 0 : i32
    return %arg0, %c0_i32 : i32, i32
  }
  func.func @transform_1(%arg0: i32) -> (i32, i32) {
    %c0_i32 = arith.constant 0 : i32
    %c0_i32_0 = arith.constant 0 : i32
    return %arg0, %c0_i32 : i32, i32
  }
  func.func @transform_2(%arg0: i32) -> (i32, i32) {
    %c0_i32 = arith.constant 0 : i32
    %c0_i32_0 = arith.constant 0 : i32
    return %arg0, %c0_i32 : i32, i32
  }
}

</mosaic_0001>

<llo_original>
// kernel: tpu_custom_call.1
$region0: #{tpu_custom_call.1}
  #allocation0 [shape = 'u32[]', space=smem, size = 0x4, offset = 0x4, fixed_abs, tag = 'smem constant byte address 0x4 - core index']
  #allocation1 [shape = 'u32[144,128]{1,0:T(1,128)}', space=vmem, size = 0x12000, scoped, tag = 'internal scratch']
  %s0 = inlined_call_operand.hbm [shape: f32[2,1024], index: 0, kind: input, shape index: {}]
  %s1 = inlined_call_operand.hbm [shape: f32[2,1024], index: 1, kind: input, shape index: {}]
  %s2 = inlined_call_operand.hbm [shape: f32[2,1024], index: 2, kind: output, shape index: {}]
  %s3 = sld [smem:[#allocation0]]
  $region26: #{tpu_custom_call.1} parent=0
    _
  %s5 = ssub.s32 1, %s3
  %s6 = scalar_select 0, %s5, %s3
  $region1: #{tpu_custom_call.1} parent=0
    #allocation2 [shape = 'u8[8192]{0}', space=vmem, size = 0x2000, scoped, tag = 'input window, operand 0, single buffered']
    #allocation3 [shape = 's32[1]{0}', space=sflag, size = 0x4, scoped, tag = 'scoped memory for tpu_custom_call.1']
    #allocation4 [shape = 's32[1]{0}', space=sflag, size = 0x4, scoped, tag = 'scoped memory for tpu_custom_call.1']
    #allocation5 [shape = 'u8[8192]{0}', space=vmem, size = 0x2000, scoped, tag = 'input window, operand 1, single buffered']
    #allocation6 [shape = 's32[1]{0}', space=sflag, size = 0x4, scoped, tag = 'scoped memory for tpu_custom_call.1']
    #allocation7 [shape = 'u8[8192]{0}', space=vmem, size = 0x2000, scoped, tag = 'output window, operand 0, single buffered']
    %7 = vsyncpa [#allocation3], 0
    %8 = vsyncpa [#allocation6], 0
    %9 = vsyncpa [#allocation4], 0
    // Predicated region
    $region2: #{tpu_custom_call.1} parent=1 // pred_check
      _
    $region3: #{tpu_custom_call.1} parent=1 // pred_check_branch
      %11 = sbr.rel (0) target = $region5
    $region4: #{tpu_custom_call.1} parent=1 // pred_region
      %s13 = ssub.s32 256, 256
      %14 = vsyncadd [#allocation3], %s13
      %s16 = sshll.u32 [#allocation2], 4
      %s17 = int_to_ptr.vmem [resolvable:$true] %s16
      %19 = dma.hbm_to_vmem [thread:$0]  %s0, 256, %s17, [#allocation3]
    $region5: #{tpu_custom_call.1} parent=1 // pred_fallthru
      _
    // Predicated region
    $region6: #{tpu_custom_call.1} parent=1 // pred_check
      _
    $region7: #{tpu_custom_call.1} parent=1 // pred_check_branch
      %21 = sbr.rel (0) target = $region9
    $region8: #{tpu_custom_call.1} parent=1 // pred_region
      %s23 = ssub.s32 256, 256
      %24 = vsyncadd [#allocation6], %s23
      %s26 = sshll.u32 [#allocation5], 4
      %s27 = int_to_ptr.vmem [resolvable:$true] %s26
      %29 = dma.hbm_to_vmem [thread:$0]  %s1, 256, %s27, [#allocation6]
    $region9: #{tpu_custom_call.1} parent=1 // pred_fallthru
      _
    // Predicated region
    $region10: #{tpu_custom_call.1} parent=1 // pred_check
      _
    $region11: #{tpu_custom_call.1} parent=1 // pred_check_branch
      %31 = sbr.rel (0) target = $region13
    $region12: #{tpu_custom_call.1} parent=1 // pred_region
      %32 = dma.done [#allocation3], 256
    $region13: #{tpu_custom_call.1} parent=1 // pred_fallthru
      _
    // Predicated region
    $region14: #{tpu_custom_call.1} parent=1 // pred_check
      _
    $region15: #{tpu_custom_call.1} parent=1 // pred_check_branch
      %34 = sbr.rel (0) target = $region17
    $region16: #{tpu_custom_call.1} parent=1 // pred_region
      %35 = dma.done [#allocation6], 256
    $region17: #{tpu_custom_call.1} parent=1 // pred_fallthru
      _
    %v36 = vld [vmem:[#allocation2] sm:$0xff]
    %v37 = vld [vmem:[#allocation2 + $0x8] sm:$0xff]
    %v38 = vld [vmem:[#allocation5] sm:$0xff]
    %v39 = vld [vmem:[#allocation5 + $0x8] sm:$0xff]
    %vm40 = vcmp.gt.f32.partialorder %v38, 0.0
    %vm41 = vcmp.gt.f32.partialorder %v39, 0.0
    %v42 = vsel %vm40, 1.0, %v38
    %v43 = vsel %vm41, 1.0, %v39
    %v44 = vand.u32 2147483647, %v36
    %v45 = vand.u32 2147483647, %v37
    %v46 = vsub.f32 0.0, %v44
    %v47 = vsub.f32 0.0, %v45
    %v48 = vmul.f32 %v46, 1.442695
    %v49 = vpow.pop %v48
    %v50 = vmul.f32 %v47, 1.442695
    %v51 = vpow.pop %v50
    %v52 = vmax.f32 %v36, 0.0
    %v53 = vmax.f32 %v37, 0.0
    %v54 = vmul.f32 %v36, %v42
    %v55 = vmul.f32 %v37, %v43
    %v56 = vsub.f32 %v52, %v54
    %v57 = vsub.f32 %v53, %v55
    %v58 = vadd.f32 %v49, 1.0
    %v59 = vlog2.pop %v58
    %v60 = vmul.f32 %v59, 0.6931472
    %v61 = vmul.f32 -0.5, %v49
    %v62 = vadd.f32 %v61, 1.0
    %v63 = vmul.f32 %v62, %v49
    %v64 = vand.u32 2147483647, %v49
    %vm65 = vcmp.lt.f32.partialorder %v64, 0.0004427343
    %v66 = vsel %vm65, %v63, %v60
    %v67 = vadd.f32 %v51, 1.0
    %v68 = vlog2.pop %v67
    %v69 = vmul.f32 %v68, 0.6931472
    %v70 = vmul.f32 -0.5, %v51
    %v71 = vadd.f32 %v70, 1.0
    %v72 = vmul.f32 %v71, %v51
    %v73 = vand.u32 2147483647, %v51
    %vm74 = vcmp.lt.f32.partialorder %v73, 0.0004427343
    %v75 = vsel %vm74, %v72, %v69
    %v76 = vadd.f32 %v56, %v66
    %v77 = vadd.f32 %v57, %v75
    %vm78 = vcmp.gt.f32.partialorder %v76, 5.0
    %vm79 = vcmp.gt.f32.partialorder %v77, 5.0
    %v80 = vsub.f32 %v76, 5.0
    %v81 = vsub.f32 %v77, 5.0
    %v82 = vmax.f32 %v80, 0.0
    %v83 = vmax.f32 %v81, 0.0
    %v84 = vadd.f32 %v82, 1.0
    %v85 = vlog2.pop %v84
    %v86 = vmul.f32 %v85, 0.6931472
    %v87 = vmul.f32 -0.5, %v82
    %v88 = vadd.f32 %v87, 1.0
    %v89 = vmul.f32 %v88, %v82
    %v90 = vand.u32 2147483647, %v82
    %vm91 = vcmp.lt.f32.partialorder %v90, 0.0004427343
    %v92 = vsel %vm91, %v89, %v86
    %v93 = vadd.f32 %v83, 1.0
    %v94 = vlog2.pop %v93
    %v95 = vmul.f32 %v94, 0.6931472
    %v96 = vmul.f32 -0.5, %v83
    %v97 = vadd.f32 %v96, 1.0
    %v98 = vmul.f32 %v97, %v83
    %v99 = vand.u32 2147483647, %v83
    %vm100 = vcmp.lt.f32.partialorder %v99, 0.0004427343
    %v101 = vsel %vm100, %v98, %v95
    %v102 = vadd.f32 %v92, 5.0
    %v103 = vadd.f32 %v101, 5.0
    %v104 = vsel %vm78, %v102, %v76
    %v105 = vsel %vm79, %v103, %v77
    %v106 = vadd.f32 %v49, 1.0
    %v107 = vadd.f32 %v51, 1.0
    %v108 = vrcp.pop %v106
    %v109 = vmul.f32 1.0, %v108
    %v110 = vrcp.pop %v107
    %v111 = vmul.f32 1.0, %v110
    %vm112 = vcmp.ge.f32.partialorder %v36, 0.0
    %vm113 = vcmp.ge.f32.partialorder %v37, 0.0
    %v114 = vmul.f32 %v49, %v109
    %v115 = vmul.f32 %v51, %v111
    %v116 = vsel %vm112, %v109, %v114
    %v117 = vsel %vm113, %v111, %v115
    %v118 = vmul.f32 %v116, 2.0
    %v119 = vmul.f32 %v117, 2.0
    %v120 = vsub.f32 1.0, %v118
    %v121 = vsub.f32 1.0, %v119
    %v122 = vmul.f32 %v42, %v120
    %v123 = vmul.f32 %v43, %v121
    %v124 = vadd.f32 %v116, %v122
    %v125 = vadd.f32 %v117, %v123
    %v126 = vmul.f32 %v124, %v104
    %v127 = vmul.f32 %v125, %v105
    %v128 = vmul.f32 %v126, 0.5
    %v129 = vmul.f32 %v127, 0.5
    %vm130 = vcmp.ne.f32.partialorder %v42, %v38
    %vm131 = vcmp.ne.f32.partialorder %v43, %v39
    %v132 = vsel %vm130, %v38, 1.0
    %v133 = vsel %vm131, %v39, 1.0
    %v134 = vmul.f32 %v128, %v132
    %v135 = vmul.f32 %v129, %v133
    %136 = vst [vmem:[#allocation7] sm:$0xff] %v134
    %137 = vst [vmem:[#allocation7 + $0x8] sm:$0xff] %v135
    // Predicated region
    $region18: #{tpu_custom_call.1} parent=1 // pred_check
      _
    $region19: #{tpu_custom_call.1} parent=1 // pred_check_branch
      %139 = sbr.rel (0) target = $region21
    $region20: #{tpu_custom_call.1} parent=1 // pred_region
      %s141 = ssub.s32 256, 256
      %142 = vsyncadd [#allocation4], %s141
      %s144 = sshll.u32 [#allocation7], 4
      %s145 = int_to_ptr.vmem [resolvable:$true] %s144
      %147 = dma.vmem_to_hbm [thread:$0]  %s145, 256, %s2, [#allocation4]
    $region21: #{tpu_custom_call.1} parent=1 // pred_fallthru
      _
    // Predicated region
    $region22: #{tpu_custom_call.1} parent=1 // pred_check
      _
    $region23: #{tpu_custom_call.1} parent=1 // pred_check_branch
      %149 = sbr.rel (0) target = $region25
    $region24: #{tpu_custom_call.1} parent=1 // pred_region
      %150 = dma.done [#allocation4], 256
    $region25: #{tpu_custom_call.1} parent=1 // pred_fallthru
      _
    %151 = vsyncpa [#allocation3], 1
    %152 = vsyncpa [#allocation6], 1
    %153 = vsyncpa [#allocation4], 1

</llo_original>
